<compile_context>
chip_gen: v7x
topology: tpu7x:2x2x1
jax: 0.10.0
libtpu: 0.0.40
codegen_flags: <defaults>
</compile_context>

<pallas_src>
import jax
import jax.numpy as jnp
from jax.experimental import pallas as pl
from jax.experimental.pallas import tpu as pltpu


def _glu_kernel_single(x_ref, w_ref, b_ref, o_ref):
    """Whole reduction in one MXU matmul (K small enough to be resident)."""
    units_p = o_ref.shape[1]

    acc = jnp.dot(x_ref[...], w_ref[...], preferred_element_type=jnp.float32)
    acc = acc + b_ref[...].astype(jnp.float32)  # [1, 2*units_p] broadcast

    lin = acc[:, :units_p]                      # 128-aligned split point
    gate = jax.nn.sigmoid(acc[:, units_p:])     # exp runs on the EUP slot
    o_ref[...] = (lin * gate).astype(o_ref.dtype)


def _glu_kernel_ktiled(x_ref, w_ref, b_ref, o_ref, acc_ref):
    """K-tiled reduction with a persistent f32 VMEM accumulator."""
    k = pl.program_id(1)
    units_p = o_ref.shape[1]

    partial = jnp.dot(x_ref[...], w_ref[...], preferred_element_type=jnp.float32)

    @pl.when(k == 0)
    def _():
        acc_ref[...] = partial

    @pl.when(k > 0)
    def _():
        acc_ref[...] = acc_ref[...] + partial

    @pl.when(k == pl.num_programs(1) - 1)
    def _():
        acc = acc_ref[...] + b_ref[...].astype(jnp.float32)
        lin = acc[:, :units_p]
        gate = jax.nn.sigmoid(acc[:, units_p:])
        o_ref[...] = (lin * gate).astype(o_ref.dtype)


def gated_linear_unit(x, w1, b1, w2, b2, *, block_m=256, block_k=512):
    """x: [B, input_size]; w*: [input_size, units]; b*: [units]."""
    B, K = x.shape
    units = w1.shape[1]
    dtype = x.dtype

    # --- Pad the output/lane dimension to a multiple of 128 (lane-dense stores,
    #     128-aligned in-kernel split point). ---
    units_p = max(128, pl.cdiv(units, 128) * 128)
    pad_n = units_p - units
    w1_p = jnp.pad(w1, ((0, 0), (0, pad_n)))
    w2_p = jnp.pad(w2, ((0, 0), (0, pad_n)))
    b1_p = jnp.pad(b1, (0, pad_n))
    b2_p = jnp.pad(b2, (0, pad_n))

    # --- Fuse the two linear layers into one wide matmul. ---
    w_fused = jnp.concatenate([w1_p, w2_p], axis=1)                  # [K, 2*units_p]
    b_fused = jnp.concatenate([b1_p, b2_p]).reshape(1, 2 * units_p)  # [1, 2*units_p]

    # --- Batch tiling: TM rows per grid step (multiple of 8 sublanes). ---
    tm = min(block_m, pl.cdiv(B, 8) * 8)
    B_p = pl.cdiv(B, tm) * tm
    if B_p != B:
        x = jnp.pad(x, ((0, B_p - B), (0, 0)))

    # --- K tiling: only for large reductions (keeps the weight tile bounded
    #     so it fits v7x's 64 MiB VMEM; tk is a multiple of 128). ---
    if K > block_k:
        tk = block_k
        K_p = pl.cdiv(K, tk) * tk
        if K_p != K:
            x = jnp.pad(x, ((0, 0), (0, K_p - K)))
            w_fused = jnp.pad(w_fused, ((0, K_p - K), (0, 0)))
    else:
        tk = K
        K_p = K

    nb = B_p // tm
    nk = K_p // tk

    if nk == 1:
        kernel = _glu_kernel_single
        grid = (nb,)
        in_specs = [
            # x: tiled over batch, double-buffered by the pipeline.
            pl.BlockSpec((tm, K_p), lambda i: (i, 0)),
            # fused weight / bias: constant index_map -> VMEM-resident.
            pl.BlockSpec((K_p, 2 * units_p), lambda i: (0, 0)),
            pl.BlockSpec((1, 2 * units_p), lambda i: (0, 0)),
        ]
        out_specs = pl.BlockSpec((tm, units_p), lambda i: (i, 0))
        scratch_shapes = ()
        dims = ("parallel",)
    else:
        kernel = _glu_kernel_ktiled
        grid = (nb, nk)  # reduction axis last / innermost
        in_specs = [
            pl.BlockSpec((tm, tk), lambda i, k: (i, k)),
            pl.BlockSpec((tk, 2 * units_p), lambda i, k: (k, 0)),
            pl.BlockSpec((1, 2 * units_p), lambda i, k: (0, 0)),
        ]
        # Same output block across k -> output stays resident over the reduction.
        out_specs = pl.BlockSpec((tm, units_p), lambda i, k: (i, 0))
        scratch_shapes = [pltpu.VMEM((tm, 2 * units_p), jnp.float32)]
        dims = ("parallel", "arbitrary")

    # TODO(synk): for very wide units (2*units_p tiles >> VMEM) add an N grid
    # axis as well; typical TFT hidden sizes do not need it.
    out_p = pl.pallas_call(
        kernel,
        out_shape=jax.ShapeDtypeStruct((B_p, units_p), dtype),
        grid=grid,
        in_specs=in_specs,
        out_specs=out_specs,
        scratch_shapes=scratch_shapes,
        compiler_params=pltpu.CompilerParams(dimension_semantics=dims),
    )(x, w_fused, b_fused)

    # Strip batch and lane padding.
    return out_p[:B, :units]


def reference(x, w1, b1, w2, b2):
    lin = x @ w1 + b1
    gate = jax.nn.sigmoid(x @ w2 + b2)
    return lin * gate


if __name__ == "__main__":
    key = jax.random.PRNGKey(0)
    batch, input_size, units = 8, 32, 16

    k_x, k_w1, k_b1, k_w2, k_b2 = jax.random.split(key, 5)
    # Deterministic param init (mimics nn.Linear's uniform(-1/sqrt(in), 1/sqrt(in)))
    bound = 1.0 / (input_size ** 0.5)
    x = jax.random.normal(k_x, (batch, input_size), dtype=jnp.float32)
    w1 = jax.random.uniform(k_w1, (input_size, units), minval=-bound, maxval=bound, dtype=jnp.float32)
    b1 = jax.random.uniform(k_b1, (units,), minval=-bound, maxval=bound, dtype=jnp.float32)
    w2 = jax.random.uniform(k_w2, (input_size, units), minval=-bound, maxval=bound, dtype=jnp.float32)
    b2 = jax.random.uniform(k_b2, (units,), minval=-bound, maxval=bound, dtype=jnp.float32)

    out = gated_linear_unit(x, w1, b1, w2, b2)
    jax.block_until_ready(out)

    ref = reference(x, w1, b1, w2, b2)
    assert out.shape == (batch, units)
    assert jnp.allclose(out, ref, atol=1e-5, rtol=1e-5)

    # Exercise the K-tiled (accumulator) path as well, with a ragged batch.
    batch2, input_size2, units2 = 37, 1280, 96
    k2 = jax.random.split(key, 6)
    bound2 = 1.0 / (input_size2 ** 0.5)
    x2 = jax.random.normal(k2[0], (batch2, input_size2), dtype=jnp.float32)
    w1b = jax.random.uniform(k2[1], (input_size2, units2), minval=-bound2, maxval=bound2, dtype=jnp.float32)
    b1b = jax.random.uniform(k2[2], (units2,), minval=-bound2, maxval=bound2, dtype=jnp.float32)
    w2b = jax.random.uniform(k2[3], (input_size2, units2), minval=-bound2, maxval=bound2, dtype=jnp.float32)
    b2b = jax.random.uniform(k2[4], (units2,), minval=-bound2, maxval=bound2, dtype=jnp.float32)

    out2 = gated_linear_unit(x2, w1b, b1b, w2b, b2b)
    jax.block_until_ready(out2)
    ref2 = reference(x2, w1b, b1b, w2b, b2b)
    assert out2.shape == (batch2, units2)
    assert jnp.allclose(out2, ref2, atol=1e-4, rtol=1e-4)

    print("KERNEL_OK")
</pallas_src>

<mosaic_0001>
module attributes {stable_mosaic.version = 11 : i64} {
  func.func @_glu_kernel_single(%arg0: i32, %arg1: memref<8x32xf32, #tpu.memory_space<vmem>>, %arg2: memref<32x256xf32, #tpu.memory_space<vmem>>, %arg3: memref<1x256xf32, #tpu.memory_space<vmem>>, %arg4: memref<8x128xf32, #tpu.memory_space<vmem>>) attributes {dimension_semantics = [#tpu.dimension_semantics<parallel>], iteration_bounds = array<i64: 1>, scalar_prefetch = 0 : i64, scratch_operands = 0 : i64, tpu.core_type = #tpu.core_type<tc>, window_params = [{transform_indices = @transform_0, window_bounds = array<i64: 8, 32>}, {pipeline_mode = #tpu.pipeline_mode<synchronous>, transform_indices = @transform_1, window_bounds = array<i64: 32, 256>}, {pipeline_mode = #tpu.pipeline_mode<synchronous>, transform_indices = @transform_2, window_bounds = array<i64: 1, 256>}, {transform_indices = @transform_3, window_bounds = array<i64: 8, 128>}]} {
    %c0 = arith.constant 0 : index
    %c0_0 = arith.constant 0 : index
    %0 = vector.load %arg1[%c0, %c0_0] : memref<8x32xf32, #tpu.memory_space<vmem>>, vector<8x32xf32>
    %c0_1 = arith.constant 0 : index
    %c0_2 = arith.constant 0 : index
    %1 = vector.load %arg2[%c0_1, %c0_2] : memref<32x256xf32, #tpu.memory_space<vmem>>, vector<32x256xf32>
    %cst = arith.constant dense<0.000000e+00> : vector<8x256xf32>
    %2 = tpu.matmul %0, %1, %cst {dimension_numbers = #tpu.dot_dimension_numbers<[1], [0], [0], [1], [0, 0, 1, 1], [], []>} : vector<8x32xf32>, vector<32x256xf32>, vector<8x256xf32> -> vector<8x256xf32>
    %c0_3 = arith.constant 0 : index
    %c0_4 = arith.constant 0 : index
    %3 = vector.load %arg3[%c0_3, %c0_4] : memref<1x256xf32, #tpu.memory_space<vmem>>, vector<1x256xf32>
    %4 = vector.broadcast %3 : vector<1x256xf32> to vector<8x256xf32>
    %5 = arith.addf %2, %4 : vector<8x256xf32>
    %6 = vector.extract_strided_slice %5 {offsets = [0, 0], sizes = [8, 128], strides = [1, 1]} : vector<8x256xf32> to vector<8x128xf32>
    %7 = vector.extract_strided_slice %5 {offsets = [0, 128], sizes = [8, 128], strides = [1, 1]} : vector<8x256xf32> to vector<8x128xf32>
    %8 = arith.negf %7 : vector<8x128xf32>
    %9 = math.exp %8 : vector<8x128xf32>
    %cst_5 = arith.constant 1.000000e+00 : f32
    %10 = vector.broadcast %cst_5 : f32 to vector<8x128xf32>
    %11 = arith.addf %10, %9 : vector<8x128xf32>
    %12 = arith.divf %10, %11 : vector<8x128xf32>
    %13 = arith.mulf %6, %12 : vector<8x128xf32>
    %c0_6 = arith.constant 0 : index
    %c0_7 = arith.constant 0 : index
    %14 = vector.load %arg4[%c0_6, %c0_7] : memref<8x128xf32, #tpu.memory_space<vmem>>, vector<8x128xf32>
    tpu.vector_store %arg4[%c0_6, %c0_7], %13 {strides = array<i32>} : memref<8x128xf32, #tpu.memory_space<vmem>>, vector<8x128xf32>,
    return
  }
  func.func @transform_0(%arg0: i32) -> (i32, i32) {
    %c0_i32 = arith.constant 0 : i32
    %c0_i32_0 = arith.constant 0 : i32
    return %arg0, %c0_i32 : i32, i32
  }
  func.func @transform_1(%arg0: i32) -> (i32, i32) {
    %c0_i32 = arith.constant 0 : i32
    %c0_i32_0 = arith.constant 0 : i32
    %c0_i32_1 = arith.constant 0 : i32
    return %c0_i32, %c0_i32_0 : i32, i32
  }
  func.func @transform_2(%arg0: i32) -> (i32, i32) {
    %c0_i32 = arith.constant 0 : i32
    %c0_i32_0 = arith.constant 0 : i32
    %c0_i32_1 = arith.constant 0 : i32
    return %c0_i32, %c0_i32_0 : i32, i32
  }
  func.func @transform_3(%arg0: i32) -> (i32, i32) {
    %c0_i32 = arith.constant 0 : i32
    %c0_i32_0 = arith.constant 0 : i32
    return %arg0, %c0_i32 : i32, i32
  }
}

</mosaic_0001>

<llo_original>
// kernel: tpu_custom_call.1
$region0: #{tpu_custom_call.1}
  #allocation0 [shape = 'u32[]', space=smem, size = 0x4, offset = 0x4, fixed_abs, tag = 'smem constant byte address 0x4 - core index']
  #allocation1 [shape = 'u32[144,128]{1,0:T(1,128)}', space=vmem, size = 0x12000, scoped, tag = 'internal scratch']
  %s0 = inlined_call_operand.hbm [shape: f32[8,32], index: 0, kind: input, shape index: {}]
  %s1 = inlined_call_operand.hbm [shape: f32[32,256], index: 1, kind: input, shape index: {}]
  %s2 = inlined_call_operand.vmem [shape: f32[1,256], index: 2, kind: input, shape index: {}]
  %s3 = inlined_call_operand.hbm [shape: f32[8,128], index: 3, kind: output, shape index: {}]
  %s4 = sld [smem:[#allocation0]]
  $region30: #{tpu_custom_call.1} parent=0
    _
  %s6 = ssub.s32 1, %s4
  %s7 = scalar_select 0, %s6, %s4
  $region1: #{tpu_custom_call.1} parent=0
    #allocation2 [shape = 'u8[4096]{0}', space=vmem, size = 0x1000, scoped, tag = 'input window, operand 0, single buffered']
    #allocation3 [shape = 's32[1]{0}', space=sflag, size = 0x4, scoped, tag = 'scoped memory for tpu_custom_call.1']
    #allocation4 [shape = 's32[1]{0}', space=sflag, size = 0x4, scoped, tag = 'scoped memory for tpu_custom_call.1']
    #allocation5 [shape = 'u8[32768]{0}', space=vmem, size = 0x8000, scoped, tag = 'input window, operand 1, single buffered']
    #allocation6 [shape = 's32[1]{0}', space=sflag, size = 0x4, scoped, tag = 'scoped memory for tpu_custom_call.1']
    #allocation7 [shape = 'u8[4096]{0}', space=vmem, size = 0x1000, scoped, tag = 'output window, operand 0, single buffered']
    %8 = vsyncpa [#allocation3], 0
    %9 = vsyncpa [#allocation6], 0
    %10 = vsyncpa [#allocation4], 0
    // Predicated region
    $region2: #{tpu_custom_call.1} parent=1 // pred_check
      _
    $region3: #{tpu_custom_call.1} parent=1 // pred_check_branch
      %12 = sbr.rel (0) target = $region5
    $region4: #{tpu_custom_call.1} parent=1 // pred_region
      %s14 = ssub.s32 128, 128
      %15 = vsyncadd [#allocation3], %s14
      %s17 = sshll.u32 [#allocation2], 4
      %s18 = int_to_ptr.vmem [resolvable:$true] %s17
      %20 = dma.hbm_to_vmem [thread:$0]  %s0, 128, %s18, [#allocation3]
    $region5: #{tpu_custom_call.1} parent=1 // pred_fallthru
      _
    // Predicated region
    $region6: #{tpu_custom_call.1} parent=1 // pred_check
      _
    $region7: #{tpu_custom_call.1} parent=1 // pred_check_branch
      %22 = sbr.rel (0) target = $region9
    $region8: #{tpu_custom_call.1} parent=1 // pred_region
      %s24 = ssub.s32 1024, 1024
      %25 = vsyncadd [#allocation6], %s24
      %s26 = sshll.u32 [#allocation5], 4
      %s27 = int_to_ptr.vmem [resolvable:$true] %s26
      %32 = dma.hbm_to_vmem [thread:$0]  %s1, 1024, %s27, [#allocation6], 256, 256, 16
    $region9: #{tpu_custom_call.1} parent=1 // pred_fallthru
      _
    // Predicated region
    $region10: #{tpu_custom_call.1} parent=1 // pred_check
      _
    $region11: #{tpu_custom_call.1} parent=1 // pred_check_branch
      %34 = sbr.rel (0) target = $region13
    $region12: #{tpu_custom_call.1} parent=1 // pred_region
      _
    $region13: #{tpu_custom_call.1} parent=1 // pred_fallthru
      _
    // Predicated region
    $region14: #{tpu_custom_call.1} parent=1 // pred_check
      _
    $region15: #{tpu_custom_call.1} parent=1 // pred_check_branch
      %36 = sbr.rel (0) target = $region17
    $region16: #{tpu_custom_call.1} parent=1 // pred_region
      %37 = dma.done [#allocation3], 128
    $region17: #{tpu_custom_call.1} parent=1 // pred_fallthru
      _
    // Predicated region
    $region18: #{tpu_custom_call.1} parent=1 // pred_check
      _
    $region19: #{tpu_custom_call.1} parent=1 // pred_check_branch
      %39 = sbr.rel (0) target = $region21
    $region20: #{tpu_custom_call.1} parent=1 // pred_region
      %40 = dma.done [#allocation6], 1024
    $region21: #{tpu_custom_call.1} parent=1 // pred_fallthru
      _
    %v41 = vld [vmem:[#allocation2] sm:$0xff]
    %v42 = vld [vmem:[#allocation5] sm:$0xff]
    %v43 = vld [vmem:[#allocation5 + $0x8] sm:$0xff]
    %v44 = vld [vmem:[#allocation5 + $0x10] sm:$0xff]
    %v45 = vld [vmem:[#allocation5 + $0x18] sm:$0xff]
    %v46 = vld [vmem:[#allocation5 + $0x20] sm:$0xff]
    %v47 = vld [vmem:[#allocation5 + $0x28] sm:$0xff]
    %v48 = vld [vmem:[#allocation5 + $0x30] sm:$0xff]
    %v49 = vld [vmem:[#allocation5 + $0x38] sm:$0xff]
    %v50 = vld [vmem:[%s2] sm:$0x3]
    %v52 = vlaneseq
    %v53 = vshrl.u32 %v52, 7
    %v54 = vsub.s32 0, %v53
    %v55 = vrot.slane %v50, %v54
    %v56 = vlaneseq
    %v57 = vshrl.u32 %v56, 7
    %v58 = vsub.s32 1, %v57
    %v59 = vrot.slane %v50, %v58
    %vm62 = vcmask 261120
    %v64 = vsel %vm62, %v41, 0
    %66 = vmatprep.subr.mxu0 %v43
    %67 = vmatpush1.msra.mxu0 %v42
    %68 = vmatprep.subr.mxu0 %v45
    %69 = vmatpush1.msra.mxu0 %v44
    %70 = vmatprep.subr.mxu0 %v47
    %71 = vmatpush1.msra.mxu0 %v46
    %72 = vmatprep.subr.mxu0 %v49
    %73 = vmatpush1.msra.mxu0 %v48
    %74 = vmatprep.subr.mxu0 0.0
    %75 = vmatpush1.msra.mxu0 0.0
    %76 = vmatprep.subr.mxu0 0.0
    %77 = vmatpush1.msra.mxu0 0.0
    %78 = vmatprep.subr.mxu0 0.0
    %79 = vmatpush1.msra.mxu0 0.0
    %80 = vmatprep.subr.mxu0 0.0
    %81 = vmatpush1.msra.mxu0 0.0
    %82 = vmatprep.subr.mxu0 0.0
    %83 = vmatpush1.msra.mxu0 0.0
    %84 = vmatprep.subr.mxu0 0.0
    %85 = vmatpush1.msra.mxu0 0.0
    %86 = vmatprep.subr.mxu0 0.0
    %87 = vmatpush1.msra.mxu0 0.0
    %88 = vmatprep.subr.mxu0 0.0
    %89 = vmatpush1.msra.mxu0 0.0
    %90 = vmatprep.subr.mxu0 0.0
    %91 = vmatpush1.msra.mxu0 0.0
    %92 = vmatprep.subr.mxu0 0.0
    %93 = vmatpush1.msra.mxu0 0.0
    %94 = vmatprep.subr.mxu0 0.0
    %95 = vmatpush1.msra.mxu0 0.0
    %96 = vmatprep.subr.mxu0 0.0
    %97 = vmatpush1.msra.mxu0 0.0
    %98 = vmatprep.subr.mxu0 0.0
    %99 = vmatpush1.msra.mxu0 0.0
    %100 = vmatprep.subr.mxu0 0.0
    %101 = vmatpush1.msra.mxu0 0.0
    %102 = vmatprep.subr.mxu0 0.0
    %103 = vmatpush1.msra.mxu0 0.0
    %104 = vmatprep.subr.mxu0 0.0
    %105 = vmatpush1.msra.mxu0 0.0
    %106 = vmatprep.subr.mxu0 0.0
    %107 = vmatpush1.msra.mxu0 0.0
    %108 = vmatprep.subr.mxu0 0.0
    %109 = vmatpush1.msra.mxu0 0.0
    %110 = vmatprep.subr.mxu0 0.0
    %111 = vmatpush1.msra.mxu0 0.0
    %112 = vmatprep.subr.mxu0 0.0
    %113 = vmatpush1.msra.mxu0 0.0
    %114 = vmatprep.subr.mxu0 0.0
    %115 = vmatpush1.msra.mxu0 0.0
    %116 = vmatprep.subr.mxu0 0.0
    %117 = vmatpush1.msra.mxu0 0.0
    %118 = vmatprep.subr.mxu0 0.0
    %119 = vmatpush1.msra.mxu0 0.0
    %120 = vmatprep.subr.mxu0 0.0
    %121 = vmatpush1.msra.mxu0 0.0
    %122 = vmatprep.subr.mxu0 0.0
    %123 = vmatpush1.msra.mxu0 0.0
    %124 = vmatprep.subr.mxu0 0.0
    %125 = vmatpush1.msra.mxu0 0.0
    %126 = vmatprep.subr.mxu0 0.0
    %127 = vmatpush1.msra.mxu0 0.0
    %128 = vmatprep.subr.mxu0 0.0
    %129 = vmatpush1.msra.mxu0 0.0
    %130 = vmatprep.mubr.f32.mxu0 0.0
    %131 = vmatmul.mubr.f32.gmra.mrb[0].mxu0 %v64
    %v132 = vpop.f32.mrb[0].mxu0
    %v133 = vadd.f32 %v55, %v132
    %v134 = vpop.f32.mrb[0].mxu0
    %v135 = vadd.f32 %v59, %v134
    %136 = vdwg.mxu0
    %v137 = vxor.u32 %v135, 2147483648
    %v138 = vmul.f32 %v137, 1.442695
    %v139 = vpow.pop %v138
    %v140 = vadd.f32 %v139, 1.0
    %v141 = vrcp.pop %v140
    %v142 = vmul.f32 1.0, %v141
    %v143 = vmul.f32 %v133, %v142
    %144 = vst [vmem:[#allocation7] sm:$0xff] %v143
    // Predicated region
    $region22: #{tpu_custom_call.1} parent=1 // pred_check
      _
    $region23: #{tpu_custom_call.1} parent=1 // pred_check_branch
      %146 = sbr.rel (0) target = $region25
    $region24: #{tpu_custom_call.1} parent=1 // pred_region
      %s148 = ssub.s32 128, 128
      %149 = vsyncadd [#allocation4], %s148
      %s151 = sshll.u32 [#allocation7], 4
      %s152 = int_to_ptr.vmem [resolvable:$true] %s151
      %154 = dma.vmem_to_hbm [thread:$0]  %s152, 128, %s3, [#allocation4]
    $region25: #{tpu_custom_call.1} parent=1 // pred_fallthru
      _
    // Predicated region
    $region26: #{tpu_custom_call.1} parent=1 // pred_check
      _
    $region27: #{tpu_custom_call.1} parent=1 // pred_check_branch
      %156 = sbr.rel (0) target = $region29
    $region28: #{tpu_custom_call.1} parent=1 // pred_region
      %157 = dma.done [#allocation4], 128
    $region29: #{tpu_custom_call.1} parent=1 // pred_fallthru
      _
    %158 = vsyncpa [#allocation3], 1
    %159 = vsyncpa [#allocation6], 1
    %160 = vsyncpa [#allocation4], 1

</llo_original>
